<compile_context>
chip_gen: v5e
topology: v5e:2x2
jax: 0.10.0
libtpu: 0.0.40
codegen_flags: <defaults>
</compile_context>

<pallas_src>
import functools

import jax
import jax.numpy as jnp
from jax.experimental import pallas as pl
from jax.experimental.pallas import tpu as pltpu

LEAKY_SLOPE = 0.01   # nn.LeakyReLU default negative_slope
LANE = 128
SUBLANE = 8


def _round_up(x, m):
    return ((x + m - 1) // m) * m


def _posterior_kernel(s_ref, a_ref, w1s_ref, w1a_ref, b1_ref,
                      w2_ref, b2_ref, w3_ref, b3_ref, out_ref, *, continuous):
    # Layer 1 (concat fused): [state|action] @ W1 + b1, then LeakyReLU
    h1 = (jnp.dot(s_ref[...], w1s_ref[...], preferred_element_type=jnp.float32)
          + jnp.dot(a_ref[...], w1a_ref[...], preferred_element_type=jnp.float32)
          + b1_ref[...])
    h1 = jnp.where(h1 > 0, h1, LEAKY_SLOPE * h1)

    # Layer 2: Linear + LeakyReLU
    h2 = jnp.dot(h1, w2_ref[...], preferred_element_type=jnp.float32) + b2_ref[...]
    h2 = jnp.where(h2 > 0, h2, LEAKY_SLOPE * h2)

    # Layer 3: Linear (output lanes padded to 128 in the wrapper)
    logits = jnp.dot(h2, w3_ref[...], preferred_element_type=jnp.float32) + b3_ref[...]

    if continuous:
        out_ref[...] = logits.astype(out_ref.dtype)
    else:
        # Numerically stable softmax over the feature axis.  Padded lanes carry
        # a -1e30 bias, so exp(pad - m) underflows to 0 and does not perturb
        # the sum.  Divide goes to the EUP via approx reciprocal.
        m = jnp.max(logits, axis=1, keepdims=True)
        e = jnp.exp(logits - m)
        s = jnp.sum(e, axis=1, keepdims=True)
        out_ref[...] = (e * pl.reciprocal(s, approx=True)).astype(out_ref.dtype)


def posterior_forward(state, action, params, *, continuous=False, block_batch=512):
    """Pallas implementation of Posterior.forward."""
    w1, b1, w2, b2, w3, b3 = params
    batch, state_dim = state.shape
    action_dim = action.shape[1]
    hidden_dim = w1.shape[1]
    out_dim = w3.shape[1]

    # --- lane-dense output: pad final layer to a multiple of 128 lanes -------
    out_pad = _round_up(max(out_dim, LANE), LANE)
    pad_cols = out_pad - out_dim
    if pad_cols:
        w3p = jnp.pad(w3, ((0, 0), (0, pad_cols)))
        # -1e30 makes padded logits vanish under softmax; value is irrelevant
        # for the continuous head (padded columns are sliced away).
        pad_bias = 0.0 if continuous else -1e30
        b3p = jnp.pad(b3, ((0, 0), (0, pad_cols)), constant_values=pad_bias)
    else:
        w3p, b3p = w3, b3

    # --- fuse the concat: split W1 along its input axis -----------------------
    w1s = w1[:state_dim]
    w1a = w1[state_dim:]

    # --- batch tiling (zero-padded remainder rows are benign) -----------------
    tb = min(_round_up(block_batch, SUBLANE), _round_up(batch, SUBLANE))
    batch_p = _round_up(batch, tb)
    if batch_p != batch:
        state = jnp.pad(state, ((0, batch_p - batch), (0, 0)))
        action = jnp.pad(action, ((0, batch_p - batch), (0, 0)))
    grid = (batch_p // tb,)

    def tiled(shape):       # batch-tiled arrays
        return pl.BlockSpec(shape, lambda i: (i, 0))

    def resident(shape):    # weights/biases: same block every step -> stay in VMEM
        return pl.BlockSpec(shape, lambda i: (0, 0))

    kernel = functools.partial(_posterior_kernel, continuous=continuous)

    flops = 2 * batch_p * (state_dim * hidden_dim + action_dim * hidden_dim
                           + hidden_dim * hidden_dim + hidden_dim * out_pad)
    transcendentals = 0 if continuous else batch_p * (out_pad + 1)
    bytes_accessed = 4 * (batch_p * (state_dim + action_dim + out_pad)
                          + (state_dim + action_dim + hidden_dim) * hidden_dim
                          + hidden_dim * out_pad + 2 * hidden_dim + out_pad)

    out = pl.pallas_call(
        kernel,
        out_shape=jax.ShapeDtypeStruct((batch_p, out_pad), jnp.float32),
        grid=grid,
        in_specs=[
            tiled((tb, state_dim)),
            tiled((tb, action_dim)),
            resident(w1s.shape), resident(w1a.shape), resident(b1.shape),
            resident(w2.shape), resident(b2.shape),
            resident(w3p.shape), resident(b3p.shape),
        ],
        out_specs=tiled((tb, out_pad)),
        compiler_params=pltpu.CompilerParams(
            dimension_semantics=("parallel",)),
        cost_estimate=pl.CostEstimate(
            flops=flops,
            transcendentals=transcendentals,
            bytes_accessed=bytes_accessed),
    )(state, action, w1s, w1a, b1, w2, b2, w3p, b3p)

    return out[:batch, :out_dim]


def init_params(key, input_dim, hidden_dim, latent_dim, continuous=False):
    """Deterministic init mimicking nn.Linear's U(-1/sqrt(fan_in), 1/sqrt(fan_in))."""
    out_dim = latent_dim + 1 if continuous else latent_dim
    dims = [(input_dim, hidden_dim), (hidden_dim, hidden_dim), (hidden_dim, out_dim)]
    params = []
    for (fan_in, fan_out) in dims:
        key, kw, kb = jax.random.split(key, 3)
        bound = 1.0 / jnp.sqrt(fan_in)
        w = jax.random.uniform(kw, (fan_in, fan_out), jnp.float32, -bound, bound)
        b = jax.random.uniform(kb, (1, fan_out), jnp.float32, -bound, bound)
        params += [w, b]
    return tuple(params)


def _reference_forward(state, action, params, continuous=False):
    w1, b1, w2, b2, w3, b3 = params
    x = jnp.concatenate([state, action], axis=1)
    h = x @ w1 + b1
    h = jnp.where(h > 0, h, LEAKY_SLOPE * h)
    h = h @ w2 + b2
    h = jnp.where(h > 0, h, LEAKY_SLOPE * h)
    logits = h @ w3 + b3
    if continuous:
        return logits
    return jax.nn.softmax(logits, axis=1)


if __name__ == "__main__":
    batch = 8
    state_dim = 24
    action_dim = 8
    input_dim = state_dim + action_dim   # 32
    hidden_dim = 32
    latent_dim = 8

    key = jax.random.PRNGKey(0)
    k_state, k_action, k_params = jax.random.split(key, 3)
    state = jax.random.normal(k_state, (batch, state_dim), jnp.float32)
    action = jax.random.normal(k_action, (batch, action_dim), jnp.float32)

    # Discrete head (Softmax output)
    params_d = init_params(k_params, input_dim, hidden_dim, latent_dim,
                           continuous=False)
    out_d = posterior_forward(state, action, params_d, continuous=False)
    out_d = jax.block_until_ready(out_d)
    ref_d = _reference_forward(state, action, params_d, continuous=False)
    assert out_d.shape == (batch, latent_dim)
    # approx reciprocal in the softmax epilogue => slightly looser tolerance
    assert jnp.allclose(out_d, ref_d, atol=1e-3, rtol=1e-3), "discrete mismatch"

    # Continuous head (raw mu | log_scale output)
    params_c = init_params(k_params, input_dim, hidden_dim, latent_dim,
                           continuous=True)
    out_c = posterior_forward(state, action, params_c, continuous=True)
    out_c = jax.block_until_ready(out_c)
    ref_c = _reference_forward(state, action, params_c, continuous=True)
    assert out_c.shape == (batch, latent_dim + 1)
    assert jnp.allclose(out_c, ref_c, atol=1e-5, rtol=1e-5), "continuous mismatch"

    print("KERNEL_OK")
</pallas_src>

<mosaic_0001>
module attributes {stable_mosaic.version = 11 : i64} {
  func.func @_posterior_kernel(%arg0: i32, %arg1: memref<8x24xf32, #tpu.memory_space<vmem>>, %arg2: memref<8x8xf32, #tpu.memory_space<vmem>>, %arg3: memref<24x32xf32, #tpu.memory_space<vmem>>, %arg4: memref<8x32xf32, #tpu.memory_space<vmem>>, %arg5: memref<1x32xf32, #tpu.memory_space<vmem>>, %arg6: memref<32x32xf32, #tpu.memory_space<vmem>>, %arg7: memref<1x32xf32, #tpu.memory_space<vmem>>, %arg8: memref<32x128xf32, #tpu.memory_space<vmem>>, %arg9: memref<1x128xf32, #tpu.memory_space<vmem>>, %arg10: memref<8x128xf32, #tpu.memory_space<vmem>>) attributes {dimension_semantics = [#tpu.dimension_semantics<parallel>], iteration_bounds = array<i64: 1>, scalar_prefetch = 0 : i64, scratch_operands = 0 : i64, tpu.core_type = #tpu.core_type<tc>, window_params = [{transform_indices = @transform_0, window_bounds = array<i64: 8, 24>}, {transform_indices = @transform_1, window_bounds = array<i64: 8, 8>}, {pipeline_mode = #tpu.pipeline_mode<synchronous>, transform_indices = @transform_2, window_bounds = array<i64: 24, 32>}, {pipeline_mode = #tpu.pipeline_mode<synchronous>, transform_indices = @transform_3, window_bounds = array<i64: 8, 32>}, {pipeline_mode = #tpu.pipeline_mode<synchronous>, transform_indices = @transform_4, window_bounds = array<i64: 1, 32>}, {pipeline_mode = #tpu.pipeline_mode<synchronous>, transform_indices = @transform_5, window_bounds = array<i64: 32, 32>}, {pipeline_mode = #tpu.pipeline_mode<synchronous>, transform_indices = @transform_6, window_bounds = array<i64: 1, 32>}, {pipeline_mode = #tpu.pipeline_mode<synchronous>, transform_indices = @transform_7, window_bounds = array<i64: 32, 128>}, {pipeline_mode = #tpu.pipeline_mode<synchronous>, transform_indices = @transform_8, window_bounds = array<i64: 1, 128>}, {transform_indices = @transform_9, window_bounds = array<i64: 8, 128>}]} {
    %c0 = arith.constant 0 : index
    %c0_0 = arith.constant 0 : index
    %0 = vector.load %arg1[%c0, %c0_0] : memref<8x24xf32, #tpu.memory_space<vmem>>, vector<8x24xf32>
    %c0_1 = arith.constant 0 : index
    %c0_2 = arith.constant 0 : index
    %1 = vector.load %arg3[%c0_1, %c0_2] : memref<24x32xf32, #tpu.memory_space<vmem>>, vector<24x32xf32>
    %cst = arith.constant dense<0.000000e+00> : vector<8x32xf32>
    %2 = tpu.matmul %0, %1, %cst {dimension_numbers = #tpu.dot_dimension_numbers<[1], [0], [0], [1], [0, 0, 1, 1], [], []>} : vector<8x24xf32>, vector<24x32xf32>, vector<8x32xf32> -> vector<8x32xf32>
    %c0_3 = arith.constant 0 : index
    %c0_4 = arith.constant 0 : index
    %3 = vector.load %arg2[%c0_3, %c0_4] : memref<8x8xf32, #tpu.memory_space<vmem>>, vector<8x8xf32>
    %c0_5 = arith.constant 0 : index
    %c0_6 = arith.constant 0 : index
    %4 = vector.load %arg4[%c0_5, %c0_6] : memref<8x32xf32, #tpu.memory_space<vmem>>, vector<8x32xf32>
    %cst_7 = arith.constant dense<0.000000e+00> : vector<8x32xf32>
    %5 = tpu.matmul %3, %4, %cst_7 {dimension_numbers = #tpu.dot_dimension_numbers<[1], [0], [0], [1], [0, 0, 1, 1], [], []>} : vector<8x8xf32>, vector<8x32xf32>, vector<8x32xf32> -> vector<8x32xf32>
    %6 = arith.addf %2, %5 : vector<8x32xf32>
    %c0_8 = arith.constant 0 : index
    %c0_9 = arith.constant 0 : index
    %7 = vector.load %arg5[%c0_8, %c0_9] : memref<1x32xf32, #tpu.memory_space<vmem>>, vector<1x32xf32>
    %8 = vector.broadcast %7 : vector<1x32xf32> to vector<8x32xf32>
    %9 = arith.addf %6, %8 : vector<8x32xf32>
    %cst_10 = arith.constant 0.000000e+00 : f32
    %10 = vector.broadcast %cst_10 : f32 to vector<8x32xf32>
    %11 = arith.cmpf ogt, %9, %10 : vector<8x32xf32>
    %cst_11 = arith.constant 0.00999999977 : f32
    %12 = vector.broadcast %cst_11 : f32 to vector<8x32xf32>
    %13 = arith.mulf %12, %9 : vector<8x32xf32>
    %14 = arith.select %11, %9, %13 : vector<8x32xi1>, vector<8x32xf32>
    %c0_12 = arith.constant 0 : index
    %c0_13 = arith.constant 0 : index
    %15 = vector.load %arg6[%c0_12, %c0_13] : memref<32x32xf32, #tpu.memory_space<vmem>>, vector<32x32xf32>
    %cst_14 = arith.constant dense<0.000000e+00> : vector<8x32xf32>
    %16 = tpu.matmul %14, %15, %cst_14 {dimension_numbers = #tpu.dot_dimension_numbers<[1], [0], [0], [1], [0, 0, 1, 1], [], []>} : vector<8x32xf32>, vector<32x32xf32>, vector<8x32xf32> -> vector<8x32xf32>
    %c0_15 = arith.constant 0 : index
    %c0_16 = arith.constant 0 : index
    %17 = vector.load %arg7[%c0_15, %c0_16] : memref<1x32xf32, #tpu.memory_space<vmem>>, vector<1x32xf32>
    %18 = vector.broadcast %17 : vector<1x32xf32> to vector<8x32xf32>
    %19 = arith.addf %16, %18 : vector<8x32xf32>
    %cst_17 = arith.constant 0.000000e+00 : f32
    %20 = vector.broadcast %cst_17 : f32 to vector<8x32xf32>
    %21 = arith.cmpf ogt, %19, %20 : vector<8x32xf32>
    %cst_18 = arith.constant 0.00999999977 : f32
    %22 = vector.broadcast %cst_18 : f32 to vector<8x32xf32>
    %23 = arith.mulf %22, %19 : vector<8x32xf32>
    %24 = arith.select %21, %19, %23 : vector<8x32xi1>, vector<8x32xf32>
    %c0_19 = arith.constant 0 : index
    %c0_20 = arith.constant 0 : index
    %25 = vector.load %arg8[%c0_19, %c0_20] : memref<32x128xf32, #tpu.memory_space<vmem>>, vector<32x128xf32>
    %cst_21 = arith.constant dense<0.000000e+00> : vector<8x128xf32>
    %26 = tpu.matmul %24, %25, %cst_21 {dimension_numbers = #tpu.dot_dimension_numbers<[1], [0], [0], [1], [0, 0, 1, 1], [], []>} : vector<8x32xf32>, vector<32x128xf32>, vector<8x128xf32> -> vector<8x128xf32>
    %c0_22 = arith.constant 0 : index
    %c0_23 = arith.constant 0 : index
    %27 = vector.load %arg9[%c0_22, %c0_23] : memref<1x128xf32, #tpu.memory_space<vmem>>, vector<1x128xf32>
    %28 = vector.broadcast %27 : vector<1x128xf32> to vector<8x128xf32>
    %29 = arith.addf %26, %28 : vector<8x128xf32>
    %cst_24 = arith.constant dense<0xFF800000> : vector<8xf32>
    %30 = vector.multi_reduction <maximumf>, %29, %cst_24 [1] : vector<8x128xf32> to vector<8xf32>
    %31 = vector.shape_cast %30 : vector<8xf32> to vector<8x1xf32>
    %32 = vector.broadcast %31 : vector<8x1xf32> to vector<8x128xf32>
    %33 = arith.subf %29, %32 : vector<8x128xf32>
    %34 = math.exp %33 : vector<8x128xf32>
    %cst_25 = arith.constant dense<0.000000e+00> : vector<8xf32>
    %35 = vector.multi_reduction <add>, %34, %cst_25 [1] : vector<8x128xf32> to vector<8xf32>
    %36 = vector.shape_cast %35 : vector<8xf32> to vector<8x1xf32>
    %37 = tpu.reciprocal %36 {approx = true} : vector<8x1xf32> -> vector<8x1xf32>
    %38 = vector.broadcast %37 : vector<8x1xf32> to vector<8x128xf32>
    %39 = arith.mulf %34, %38 : vector<8x128xf32>
    %c0_26 = arith.constant 0 : index
    %c0_27 = arith.constant 0 : index
    %40 = vector.load %arg10[%c0_26, %c0_27] : memref<8x128xf32, #tpu.memory_space<vmem>>, vector<8x128xf32>
    tpu.vector_store %arg10[%c0_26, %c0_27], %39 {strides = array<i32>} : memref<8x128xf32, #tpu.memory_space<vmem>>, vector<8x128xf32>,
    return
  }
  func.func @transform_0(%arg0: i32) -> (i32, i32) {
    %c0_i32 = arith.constant 0 : i32
    %c0_i32_0 = arith.constant 0 : i32
    return %arg0, %c0_i32 : i32, i32
  }
  func.func @transform_1(%arg0: i32) -> (i32, i32) {
    %c0_i32 = arith.constant 0 : i32
    %c0_i32_0 = arith.constant 0 : i32
    return %arg0, %c0_i32 : i32, i32
  }
  func.func @transform_2(%arg0: i32) -> (i32, i32) {
    %c0_i32 = arith.constant 0 : i32
    %c0_i32_0 = arith.constant 0 : i32
    %c0_i32_1 = arith.constant 0 : i32
    return %c0_i32, %c0_i32_0 : i32, i32
  }
  func.func @transform_3(%arg0: i32) -> (i32, i32) {
    %c0_i32 = arith.constant 0 : i32
    %c0_i32_0 = arith.constant 0 : i32
    %c0_i32_1 = arith.constant 0 : i32
    return %c0_i32, %c0_i32_0 : i32, i32
  }
  func.func @transform_4(%arg0: i32) -> (i32, i32) {
    %c0_i32 = arith.constant 0 : i32
    %c0_i32_0 = arith.constant 0 : i32
    %c0_i32_1 = arith.constant 0 : i32
    return %c0_i32, %c0_i32_0 : i32, i32
  }
  func.func @transform_5(%arg0: i32) -> (i32, i32) {
    %c0_i32 = arith.constant 0 : i32
    %c0_i32_0 = arith.constant 0 : i32
    %c0_i32_1 = arith.constant 0 : i32
    return %c0_i32, %c0_i32_0 : i32, i32
  }
  func.func @transform_6(%arg0: i32) -> (i32, i32) {
    %c0_i32 = arith.constant 0 : i32
    %c0_i32_0 = arith.constant 0 : i32
    %c0_i32_1 = arith.constant 0 : i32
    return %c0_i32, %c0_i32_0 : i32, i32
  }
  func.func @transform_7(%arg0: i32) -> (i32, i32) {
    %c0_i32 = arith.constant 0 : i32
    %c0_i32_0 = arith.constant 0 : i32
    %c0_i32_1 = arith.constant 0 : i32
    return %c0_i32, %c0_i32_0 : i32, i32
  }
  func.func @transform_8(%arg0: i32) -> (i32, i32) {
    %c0_i32 = arith.constant 0 : i32
    %c0_i32_0 = arith.constant 0 : i32
    %c0_i32_1 = arith.constant 0 : i32
    return %c0_i32, %c0_i32_0 : i32, i32
  }
  func.func @transform_9(%arg0: i32) -> (i32, i32) {
    %c0_i32 = arith.constant 0 : i32
    %c0_i32_0 = arith.constant 0 : i32
    return %arg0, %c0_i32 : i32, i32
  }
}

</mosaic_0001>

<llo_original>
// kernel: tpu_custom_call.1
$region0: #{tpu_custom_call.1}
  #allocation0 [shape = 'u32[]', space=smem, size = 0x4, offset = 0x4, fixed_abs, tag = 'smem constant byte address 0x4 - core index']
  #allocation1 [shape = 'u32[72,128]{1,0:T(1,128)}', space=vmem, size = 0x9000, scoped, tag = 'internal scratch']
  %s0 = inlined_call_operand.hbm [shape: f32[8,24], index: 0, kind: input, shape index: {}]
  %s1 = inlined_call_operand.hbm [shape: f32[8,8], index: 1, kind: input, shape index: {}]
  %s2 = inlined_call_operand.hbm [shape: f32[24,32], index: 2, kind: input, shape index: {}]
  %s3 = inlined_call_operand.hbm [shape: f32[8,32], index: 3, kind: input, shape index: {}]
  %s4 = inlined_call_operand.vmem [shape: f32[1,32], index: 4, kind: input, shape index: {}]
  %s5 = inlined_call_operand.hbm [shape: f32[32,32], index: 5, kind: input, shape index: {}]
  %s6 = inlined_call_operand.vmem [shape: f32[1,32], index: 6, kind: input, shape index: {}]
  %s7 = inlined_call_operand.hbm [shape: f32[32,128], index: 7, kind: input, shape index: {}]
  %s8 = inlined_call_operand.vmem [shape: f32[1,128], index: 8, kind: input, shape index: {}]
  %s9 = inlined_call_operand.hbm [shape: f32[8,128], index: 9, kind: output, shape index: {}]
  %s10 = sld [smem:[#allocation0]]
  $region70: #{tpu_custom_call.1} parent=0
    _
  %s12 = ssub.s32 1, %s10
  %s13 = scalar_select 0, %s12, %s10
  $region1: #{tpu_custom_call.1} parent=0
    #allocation2 [shape = 'u8[4096]{0}', space=vmem, size = 0x1000, scoped, tag = 'input window, operand 0, single buffered']
    #allocation3 [shape = 's32[1]{0}', space=sflag, size = 0x4, scoped, tag = 'scoped memory for tpu_custom_call.1']
    #allocation4 [shape = 's32[1]{0}', space=sflag, size = 0x4, scoped, tag = 'scoped memory for tpu_custom_call.1']
    #allocation5 [shape = 'u8[4096]{0}', space=vmem, size = 0x1000, scoped, tag = 'input window, operand 1, single buffered']
    #allocation6 [shape = 's32[1]{0}', space=sflag, size = 0x4, scoped, tag = 'scoped memory for tpu_custom_call.1']
    #allocation7 [shape = 'u8[12288]{0}', space=vmem, size = 0x3000, scoped, tag = 'input window, operand 2, single buffered']
    #allocation8 [shape = 'u8[4096]{0}', space=vmem, size = 0x1000, scoped, tag = 'input window, operand 3, single buffered']
    #allocation9 [shape = 's32[1]{0}', space=sflag, size = 0x4, scoped, tag = 'scoped memory for tpu_custom_call.1']
    #allocation10 [shape = 'u8[16384]{0}', space=vmem, size = 0x4000, scoped, tag = 'input window, operand 5, single buffered']
    #allocation11 [shape = 'u8[16384]{0}', space=vmem, size = 0x4000, scoped, tag = 'input window, operand 7, single buffered']
    #allocation12 [shape = 's32[1]{0}', space=sflag, size = 0x4, scoped, tag = 'scoped memory for tpu_custom_call.1']
    #allocation13 [shape = 'u8[4096]{0}', space=vmem, size = 0x1000, scoped, tag = 'output window, operand 0, single buffered']
    %14 = vsyncpa [#allocation3], 0
    %15 = vsyncpa [#allocation6], 0
    %16 = vsyncpa [#allocation9], 0
    %17 = vsyncpa [#allocation12], 0
    %18 = vsyncpa [#allocation4], 0
    // Predicated region
    $region2: #{tpu_custom_call.1} parent=1 // pred_check
      _
    $region3: #{tpu_custom_call.1} parent=1 // pred_check_branch
      %20 = sbr.rel (0) target = $region5
    $region4: #{tpu_custom_call.1} parent=1 // pred_region
      %22 = vsyncadd [#allocation3], 0
      %s24 = sshll.u32 %s0, 4
      %s25 = int_to_ptr.hbm [resolvable:$true] %s24
      %s26 = sshll.u32 [#allocation2], 4
      %s27 = int_to_ptr.vmem [resolvable:$true] %s26
      %29 = dma.hbm_to_vmem [thread:$0]  %s25, 128, %s27, [#allocation3]
    $region5: #{tpu_custom_call.1} parent=1 // pred_fallthru
      _
    // Predicated region
    $region6: #{tpu_custom_call.1} parent=1 // pred_check
      _
    $region7: #{tpu_custom_call.1} parent=1 // pred_check_branch
      %31 = sbr.rel (0) target = $region9
    $region8: #{tpu_custom_call.1} parent=1 // pred_region
      %33 = vsyncadd [#allocation6], 0
      %s35 = sshll.u32 %s1, 4
      %s36 = int_to_ptr.hbm [resolvable:$true] %s35
      %s37 = sshll.u32 [#allocation5], 4
      %s38 = int_to_ptr.vmem [resolvable:$true] %s37
      %40 = dma.hbm_to_vmem [thread:$0]  %s36, 128, %s38, [#allocation6]
    $region9: #{tpu_custom_call.1} parent=1 // pred_fallthru
      _
    // Predicated region
    $region10: #{tpu_custom_call.1} parent=1 // pred_check
      _
    $region11: #{tpu_custom_call.1} parent=1 // pred_check_branch
      %42 = sbr.rel (0) target = $region13
    $region12: #{tpu_custom_call.1} parent=1 // pred_region
      %44 = vsyncadd [#allocation6], 0
      %s45 = sshll.u32 %s2, 4
      %s46 = int_to_ptr.hbm [resolvable:$true] %s45
      %s47 = sshll.u32 [#allocation7], 4
      %s48 = int_to_ptr.vmem [resolvable:$true] %s47
      %53 = dma.hbm_to_vmem [thread:$0]  %s46, 384, %s48, [#allocation6], 128, 128, 8
    $region13: #{tpu_custom_call.1} parent=1 // pred_fallthru
      _
    // Predicated region
    $region14: #{tpu_custom_call.1} parent=1 // pred_check
      _
    $region15: #{tpu_custom_call.1} parent=1 // pred_check_branch
      %55 = sbr.rel (0) target = $region17
    $region16: #{tpu_custom_call.1} parent=1 // pred_region
      %57 = vsyncadd [#allocation9], 0
      %s59 = sshll.u32 %s3, 4
      %s60 = int_to_ptr.hbm [resolvable:$true] %s59
      %s61 = sshll.u32 [#allocation8], 4
      %s62 = int_to_ptr.vmem [resolvable:$true] %s61
      %64 = dma.hbm_to_vmem [thread:$0]  %s60, 128, %s62, [#allocation9]
    $region17: #{tpu_custom_call.1} parent=1 // pred_fallthru
      _
    // Predicated region
    $region18: #{tpu_custom_call.1} parent=1 // pred_check
      _
    $region19: #{tpu_custom_call.1} parent=1 // pred_check_branch
      %66 = sbr.rel (0) target = $region21
    $region20: #{tpu_custom_call.1} parent=1 // pred_region
      _
    $region21: #{tpu_custom_call.1} parent=1 // pred_fallthru
      _
    // Predicated region
    $region22: #{tpu_custom_call.1} parent=1 // pred_check
      _
    $region23: #{tpu_custom_call.1} parent=1 // pred_check_branch
      %68 = sbr.rel (0) target = $region25
    $region24: #{tpu_custom_call.1} parent=1 // pred_region
      %70 = vsyncadd [#allocation9], 0
      %s71 = sshll.u32 %s5, 4
      %s72 = int_to_ptr.hbm [resolvable:$true] %s71
      %s73 = sshll.u32 [#allocation10], 4
      %s74 = int_to_ptr.vmem [resolvable:$true] %s73
      %79 = dma.hbm_to_vmem [thread:$0]  %s72, 512, %s74, [#allocation9], 128, 128, 8
    $region25: #{tpu_custom_call.1} parent=1 // pred_fallthru
      _
    // Predicated region
    $region26: #{tpu_custom_call.1} parent=1 // pred_check
      _
    $region27: #{tpu_custom_call.1} parent=1 // pred_check_branch
      %81 = sbr.rel (0) target = $region29
    $region28: #{tpu_custom_call.1} parent=1 // pred_region
      _
    $region29: #{tpu_custom_call.1} parent=1 // pred_fallthru
      _
    // Predicated region
    $region30: #{tpu_custom_call.1} parent=1 // pred_check
      _
    $region31: #{tpu_custom_call.1} parent=1 // pred_check_branch
      %83 = sbr.rel (0) target = $region33
    $region32: #{tpu_custom_call.1} parent=1 // pred_region
      %85 = vsyncadd [#allocation12], 0
      %s86 = sshll.u32 %s7, 4
      %s87 = int_to_ptr.hbm [resolvable:$true] %s86
      %s88 = sshll.u32 [#allocation11], 4
      %s89 = int_to_ptr.vmem [resolvable:$true] %s88
      %94 = dma.hbm_to_vmem [thread:$0]  %s87, 512, %s89, [#allocation12], 128, 128, 8
    $region33: #{tpu_custom_call.1} parent=1 // pred_fallthru
      _
    // Predicated region
    $region34: #{tpu_custom_call.1} parent=1 // pred_check
      _
    $region35: #{tpu_custom_call.1} parent=1 // pred_check_branch
      %96 = sbr.rel (0) target = $region37
    $region36: #{tpu_custom_call.1} parent=1 // pred_region
      _
    $region37: #{tpu_custom_call.1} parent=1 // pred_fallthru
      _
    // Predicated region
    $region38: #{tpu_custom_call.1} parent=1 // pred_check
      _
    $region39: #{tpu_custom_call.1} parent=1 // pred_check_branch
      %98 = sbr.rel (0) target = $region41
    $region40: #{tpu_custom_call.1} parent=1 // pred_region
      %100 = dma.done [#allocation3], 128
    $region41: #{tpu_custom_call.1} parent=1 // pred_fallthru
      _
    // Predicated region
    $region42: #{tpu_custom_call.1} parent=1 // pred_check
      _
    $region43: #{tpu_custom_call.1} parent=1 // pred_check_branch
      %102 = sbr.rel (0) target = $region45
    $region44: #{tpu_custom_call.1} parent=1 // pred_region
      %104 = dma.done [#allocation6], 128
    $region45: #{tpu_custom_call.1} parent=1 // pred_fallthru
      _
    // Predicated region
    $region46: #{tpu_custom_call.1} parent=1 // pred_check
      _
    $region47: #{tpu_custom_call.1} parent=1 // pred_check_branch
      %106 = sbr.rel (0) target = $region49
    $region48: #{tpu_custom_call.1} parent=1 // pred_region
      %108 = dma.done [#allocation6], 384
    $region49: #{tpu_custom_call.1} parent=1 // pred_fallthru
      _
    // Predicated region
    $region50: #{tpu_custom_call.1} parent=1 // pred_check
      _
    $region51: #{tpu_custom_call.1} parent=1 // pred_check_branch
      %110 = sbr.rel (0) target = $region53
    $region52: #{tpu_custom_call.1} parent=1 // pred_region
      %112 = dma.done [#allocation9], 128
    $region53: #{tpu_custom_call.1} parent=1 // pred_fallthru
      _
    // Predicated region
    $region54: #{tpu_custom_call.1} parent=1 // pred_check
      _
    $region55: #{tpu_custom_call.1} parent=1 // pred_check_branch
      %114 = sbr.rel (0) target = $region57
    $region56: #{tpu_custom_call.1} parent=1 // pred_region
      %116 = dma.done [#allocation9], 512
    $region57: #{tpu_custom_call.1} parent=1 // pred_fallthru
      _
    // Predicated region
    $region58: #{tpu_custom_call.1} parent=1 // pred_check
      _
    $region59: #{tpu_custom_call.1} parent=1 // pred_check_branch
      %118 = sbr.rel (0) target = $region61
    $region60: #{tpu_custom_call.1} parent=1 // pred_region
      %120 = dma.done [#allocation12], 512
    $region61: #{tpu_custom_call.1} parent=1 // pred_fallthru
      _
    %v121 = vld [vmem:[#allocation2] sm:$0xff]
    %v122 = vld [vmem:[#allocation7] sm:$0xff]
    %v123 = vld [vmem:[#allocation7 + $0x8] sm:$0xff]
    %v124 = vld [vmem:[#allocation7 + $0x10] sm:$0xff]
    %v125 = vld [vmem:[#allocation5] sm:$0xff]
    %v126 = vld [vmem:[#allocation8] sm:$0xff]
    %vm127 = vcmask 64512
    %v129 = vsel %vm127, %v125, 0
    %131 = vmatpush.msra.mxu0 0.0
    %132 = vmatpush.msra.mxu0 0.0
    %133 = vmatpush.msra.mxu0 0.0
    %134 = vmatpush.msra.mxu0 0.0
    %135 = vmatpush.msra.mxu0 0.0
    %136 = vmatpush.msra.mxu0 0.0
    %137 = vmatpush.msra.mxu0 0.0
    %138 = vmatpush.msra.mxu0 0.0
    %139 = vmatpush.msra.mxu0 0.0
    %140 = vmatpush.msra.mxu0 0.0
    %141 = vmatpush.msra.mxu0 0.0
    %142 = vmatpush.msra.mxu0 0.0
    %143 = vmatpush.msra.mxu0 0.0
    %144 = vmatpush.msra.mxu0 0.0
    %145 = vmatpush.msra.mxu0 0.0
    %146 = vmatpush.msra.mxu0 %v126
    %147 = vmatmul.f32.gmra.mxu0 %v129
    %v148 = vpop.f32.mrf.mxu0
    %v149 = vadd.f32 0.0, %v148
    %150 = vdwg.mxu0
    %vm151 = vcmask 195584
    %v153 = vsel %vm151, %v121, 0
    %155 = vmatpush.msra.mxu0 0.0
    %156 = vmatpush.msra.mxu0 0.0
    %157 = vmatpush.msra.mxu0 0.0
    %158 = vmatpush.msra.mxu0 0.0
    %159 = vmatpush.msra.mxu0 0.0
    %160 = vmatpush.msra.mxu0 0.0
    %161 = vmatpush.msra.mxu0 0.0
    %162 = vmatpush.msra.mxu0 0.0
    %163 = vmatpush.msra.mxu0 0.0
    %164 = vmatpush.msra.mxu0 0.0
    %165 = vmatpush.msra.mxu0 0.0
    %166 = vmatpush.msra.mxu0 0.0
    %167 = vmatpush.msra.mxu0 0.0
    %168 = vmatpush.msra.mxu0 %v124
    %169 = vmatpush.msra.mxu0 %v123
    %170 = vmatpush.msra.mxu0 %v122
    %171 = vmatmul.f32.gmra.mxu0 %v153
    %v172 = vpop.f32.mrf.mxu0
    %v173 = vadd.f32 %v149, %v172
    %174 = vdwg.mxu0
    %v175 = vld [vmem:[%s4] sm:$0x1]
    %v177 = vperm.slane %v175, 0
    %v179 = vadd.f32 %v173, %v177
    %vm180 = vcmp.gt.f32.partialorder %v179, 0.0
    %v181 = vmul.f32 %v179, 0.01
    %v182 = vsel %vm180, %v179, %v181
    %v183 = vld [vmem:[#allocation10] sm:$0xff]
    %v184 = vld [vmem:[#allocation10 + $0x8] sm:$0xff]
    %v185 = vld [vmem:[#allocation10 + $0x10] sm:$0xff]
    %v186 = vld [vmem:[#allocation10 + $0x18] sm:$0xff]
    %v187 = vld [vmem:[%s6] sm:$0x1]
    %v189 = vperm.slane %v187, 0
    %vm191 = vcmask 261120
    %v193 = vsel %vm191, %v182, 0
    %195 = vmatpush.msra.mxu0 0.0
    %196 = vmatpush.msra.mxu0 0.0
    %197 = vmatpush.msra.mxu0 0.0
    %198 = vmatpush.msra.mxu0 0.0
    %199 = vmatpush.msra.mxu0 0.0
    %200 = vmatpush.msra.mxu0 0.0
    %201 = vmatpush.msra.mxu0 0.0
    %202 = vmatpush.msra.mxu0 0.0
    %203 = vmatpush.msra.mxu0 0.0
    %204 = vmatpush.msra.mxu0 0.0
    %205 = vmatpush.msra.mxu0 0.0
    %206 = vmatpush.msra.mxu0 0.0
    %207 = vmatpush.msra.mxu0 %v186
    %208 = vmatpush.msra.mxu0 %v185
    %209 = vmatpush.msra.mxu0 %v184
    %210 = vmatpush.msra.mxu0 %v183
    %211 = vmatmul.f32.gmra.mxu0 %v193
    %v212 = vpop.f32.mrf.mxu0
    %v213 = vadd.f32 %v189, %v212
    %214 = vdwg.mxu0
    %vm215 = vcmp.gt.f32.partialorder %v213, 0.0
    %v216 = vmul.f32 %v213, 0.01
    %v217 = vsel %vm215, %v213, %v216
    %v218 = vld [vmem:[#allocation11] sm:$0xff]
    %v219 = vld [vmem:[#allocation11 + $0x8] sm:$0xff]
    %v220 = vld [vmem:[#allocation11 + $0x10] sm:$0xff]
    %v221 = vld [vmem:[#allocation11 + $0x18] sm:$0xff]
    %v222 = vld [vmem:[%s8] sm:$0x1]
    %v224 = vperm.slane %v222, 0
    %v227 = vsel %vm191, %v217, 0
    %229 = vmatpush.msra.mxu0 0.0
    %230 = vmatpush.msra.mxu0 0.0
    %231 = vmatpush.msra.mxu0 0.0
    %232 = vmatpush.msra.mxu0 0.0
    %233 = vmatpush.msra.mxu0 0.0
    %234 = vmatpush.msra.mxu0 0.0
    %235 = vmatpush.msra.mxu0 0.0
    %236 = vmatpush.msra.mxu0 0.0
    %237 = vmatpush.msra.mxu0 0.0
    %238 = vmatpush.msra.mxu0 0.0
    %239 = vmatpush.msra.mxu0 0.0
    %240 = vmatpush.msra.mxu0 0.0
    %241 = vmatpush.msra.mxu0 %v221
    %242 = vmatpush.msra.mxu0 %v220
    %243 = vmatpush.msra.mxu0 %v219
    %244 = vmatpush.msra.mxu0 %v218
    %245 = vmatmul.f32.gmra.mxu0 %v227
    %v246 = vpop.f32.mrf.mxu0
    %v247 = vadd.f32 %v224, %v246
    %248 = vdwg.mxu0
    %249 = vmax.xlane.f32.xlu0 %v247
    %v250 = vpop.xlane.xlu0 %249
    %v251 = vsub.f32 %v247, %v250
    %v252 = vmul.f32 %v251, 1.442695
    %v253 = vpow.pop %v252
    %254 = vadd.xlane.f32.xlu0 %v253
    %v255 = vpop.xlane.xlu0 %254
    %v256 = vrcp.pop %v255
    %v257 = vmul.f32 %v253, %v256
    %258 = vst [vmem:[#allocation13] sm:$0xff] %v257
    // Predicated region
    $region62: #{tpu_custom_call.1} parent=1 // pred_check
      _
    $region63: #{tpu_custom_call.1} parent=1 // pred_check_branch
      %260 = sbr.rel (0) target = $region65
    $region64: #{tpu_custom_call.1} parent=1 // pred_region
      %262 = vsyncadd [#allocation4], 0
      %s264 = sshll.u32 [#allocation13], 4
      %s265 = int_to_ptr.vmem [resolvable:$true] %s264
      %s266 = sshll.u32 %s9, 4
      %s267 = int_to_ptr.hbm [resolvable:$true] %s266
      %269 = dma.vmem_to_hbm [thread:$0]  %s265, 128, %s267, [#allocation4]
    $region65: #{tpu_custom_call.1} parent=1 // pred_fallthru
      _
    // Predicated region
    $region66: #{tpu_custom_call.1} parent=1 // pred_check
      _
    $region67: #{tpu_custom_call.1} parent=1 // pred_check_branch
      %271 = sbr.rel (0) target = $region69
    $region68: #{tpu_custom_call.1} parent=1 // pred_region
      %273 = dma.done [#allocation4], 128
    $region69: #{tpu_custom_call.1} parent=1 // pred_fallthru
      _
    %274 = vsyncpa [#allocation3], 1
    %275 = vsyncpa [#allocation6], 1
    %276 = vsyncpa [#allocation9], 1
    %277 = vsyncpa [#allocation12], 1
    %278 = vsyncpa [#allocation4], 1

</llo_original>
